<compile_context>
chip_gen: v6e
topology: v6e:2x2x1
jax: 0.10.0
libtpu: 0.0.40
codegen_flags: <defaults>
</compile_context>

<pallas_src>
import functools

import jax
import jax.numpy as jnp
from jax.experimental import pallas as pl
from jax.experimental.pallas import tpu as pltpu


# ---------------------------------------------------------------------------
# Pass 1: fused QKV projection.
# ---------------------------------------------------------------------------
def _qkv_proj_kernel(y_ref, x_ref, wkq_ref, wv_ref, k_ref, q_ref, v_ref,
                     *, n_embd):
    """K|Q = Y_blk @ [Wk | Wq*scale] (one GEMM), V = X_blk @ Wv (one GEMM)."""
    C = n_embd
    kq = jnp.dot(y_ref[0], wkq_ref[...],
                 preferred_element_type=jnp.float32)            # (Tp, 2C) f32
    k_ref[0] = kq[:, :C].astype(k_ref.dtype)
    q_ref[0] = kq[:, C:].astype(q_ref.dtype)   # softmax scale already folded in
    v_ref[0] = jnp.dot(x_ref[0], wv_ref[...],
                       preferred_element_type=jnp.float32).astype(v_ref.dtype)


# ---------------------------------------------------------------------------
# Pass 2: flash-style cross-attention + fused output projection.
# ---------------------------------------------------------------------------
def _flash_attn_kernel(q_ref, k_ref, v_ref, wp_ref, o_ref,
                       m_scr, l_scr, acc_scr, ocat_scr,
                       *, num_heads, head_size):
    """Online softmax over kv blocks; finalize = one (TQ,C)@(C,C) out-proj GEMM.

    Blocks: q_ref (1,TQ,C), k_ref/v_ref (1,TK,C), wp_ref (C,C), o_ref (1,TQ,C).
    Scratch: m/l (H,TQ,128) f32 lane-replicated, acc (H,TQ,hs) f32,
             ocat (TQ,C) compute dtype.
    """
    ki = pl.program_id(2)
    nk = pl.num_programs(2)
    cdt = q_ref.dtype
    hs = head_size

    @pl.when(ki == 0)
    def _init():
        m_scr[...] = jnp.full(m_scr.shape, -jnp.inf, dtype=jnp.float32)
        l_scr[...] = jnp.zeros(l_scr.shape, dtype=jnp.float32)
        acc_scr[...] = jnp.zeros(acc_scr.shape, dtype=jnp.float32)

    # Per-head state lives in VMEM scratch; each unrolled iteration's
    # temporaries die at its end, keeping vreg pressure bounded.
    # TODO(synk): switch to lax.fori_loop(unroll=2) for very large num_heads
    # (requires head-major Q/K/V so the per-head index is on a leading dim).
    for h in range(num_heads):
        sl = slice(h * hs, (h + 1) * hs)
        qh = q_ref[0, :, sl]                                     # (TQ, hs) cdt
        kh = k_ref[0, :, sl]                                     # (TK, hs) cdt
        vh = v_ref[0, :, sl]                                     # (TK, hs) cdt

        # NT contraction: the MXU consumes K directly (no XLU transpose);
        # the softmax scale was folded into Q in pass 1.
        s = jax.lax.dot_general(qh, kh, (((1,), (1,)), ((), ())),
                                preferred_element_type=jnp.float32)  # (TQ, TK)

        m_prev = m_scr[h]                                        # (TQ, 128)
        m_new = jnp.maximum(m_prev, jnp.max(s, axis=-1, keepdims=True))
        alpha = jnp.exp(m_prev - m_new)                          # (TQ, 128)
        p = jnp.exp(s - m_new[:, 0:1])                           # (TQ, TK) f32
        # TODO(synk): on v6e/v7x the exp can run in bf16 to relieve the EUP.
        l_scr[h] = alpha * l_scr[h] + jnp.sum(p, axis=-1, keepdims=True)
        acc_scr[h] = alpha[:, 0:1] * acc_scr[h] + jnp.dot(
            p.astype(cdt), vh, preferred_element_type=jnp.float32)
        m_scr[h] = m_new

    @pl.when(ki == nk - 1)
    def _finalize():
        # Normalize each head into one (TQ, C) buffer, then apply the output
        # projection as a single full-width GEMM: concat_h(O_h) @ Wp.
        for h in range(num_heads):
            inv = pl.reciprocal(l_scr[h, :, 0:1], approx=False)  # (TQ, 1)
            ocat_scr[:, h * hs:(h + 1) * hs] = (
                acc_scr[h] * inv).astype(ocat_scr.dtype)
        o_ref[0] = jnp.dot(ocat_scr[...], wp_ref[...],
                           preferred_element_type=jnp.float32).astype(o_ref.dtype)


# ---------------------------------------------------------------------------
# Capacity-aware sizing helpers.
# ---------------------------------------------------------------------------
def _vmem_capacity_bytes():
    # v5e/v6e: 128 MiB per TensorCore; v7x: 64 MiB.  Narrow fallback around the
    # hardware query only (never around kernel compilation).
    try:
        return int(pltpu.get_tpu_info().vmem_capacity_bytes)
    except Exception:
        return 64 * 1024 * 1024


def _pad(n, m):
    return ((n + m - 1) // m) * m


def _proj_vmem_bytes(tp, C, cs):
    """VMEM footprint of the projection pass (double-buffered blocks, padded)."""
    act_blk = _pad(tp, 8) * _pad(C, 128) * cs
    w_bytes = (_pad(C, 8) * _pad(2 * C, 128) + _pad(C, 8) * _pad(C, 128)) * cs
    # 2 input blocks + 3 output blocks + weights, all double-buffered by Pallas.
    return 2 * (5 * act_blk + w_bytes)


def _flash_vmem_bytes(tq, tk, C, H, hs, cs, out_size):
    """VMEM footprint of the attention pass (incl. 128-lane stat padding)."""
    q_blk = _pad(tq, 8) * _pad(C, 128) * cs
    kv_blk = _pad(tk, 8) * _pad(C, 128) * cs
    o_blk = _pad(tq, 8) * _pad(C, 128) * out_size
    w_blk = _pad(C, 8) * _pad(C, 128) * cs
    blocks = 2 * (q_blk + 2 * kv_blk + w_blk + o_blk)
    scratch = (2 * H * _pad(tq, 8) * 128 * 4            # m, l (lane-replicated)
               + H * _pad(tq, 8) * _pad(hs, 128) * 4    # unnormalized O (f32)
               + _pad(tq, 8) * _pad(C, 128) * cs)       # concat(O_h) buffer
    return blocks + scratch


def _pick_seq_tile(T, fits):
    """Largest candidate tile that divides T and fits the VMEM budget."""
    for t in (512, 256, 128, 64, 32, 16, 8):
        if t <= T and T % t == 0 and fits(t):
            return t
    return T  # small / odd sequence lengths: one block covering the sequence


def _clamp_limit(est, cap):
    return int(min(cap, max(int(1.3 * est), 32 * 1024 * 1024)))


# ---------------------------------------------------------------------------
# Wrapper.
# ---------------------------------------------------------------------------
def multica_forward(Y, X, wq, wk, wv, wp, *, num_heads,
                    compute_dtype=jnp.bfloat16, q_block=None, kv_block=None):
    """Y, X: (B, T, C). wq/wk/wv/wp: (C, C) stored (in, out). Returns (B, T, C).

    compute_dtype: dtype of all MXU operands (activations, Q/K/V intermediates,
    weights, softmax probabilities).  Default bfloat16 (fast path on all TPU
    generations); pass jnp.float32 for near bit-exact results on f32 inputs.
    Accumulation is always float32 via preferred_element_type.
    """
    B, T, C = X.shape
    assert Y.shape == (B, T, C)
    assert C % num_heads == 0
    H = num_heads
    hs = C // H
    cdt = jnp.dtype(compute_dtype)
    out_dtype = X.dtype
    cs = cdt.itemsize
    osz = jnp.dtype(out_dtype).itemsize

    cap = _vmem_capacity_bytes()
    budget = int(0.80 * cap)

    # Capacity-aware tile selection (keeps the resident-weight path alive on
    # v7x's 64 MiB VMEM while still using big tiles on v5e/v6e).
    tp = _pick_seq_tile(T, lambda t: _proj_vmem_bytes(t, C, cs) <= budget)
    t_attn = _pick_seq_tile(
        T, lambda t: _flash_vmem_bytes(t, t, C, H, hs, cs, osz) <= budget)
    tq = q_block or t_attn
    tk = kv_block or t_attn
    assert T % tq == 0 and T % tk == 0 and T % tp == 0

    # One-time weight/activation preparation (plain XLA, outside the kernels).
    scale = C ** (-0.5)  # module scales scores by n_embd**-0.5
    w_kq = jnp.concatenate([wk, wq * scale], axis=1).astype(cdt)     # (C, 2C)
    w_v = wv.astype(cdt)
    w_p = wp.astype(cdt)
    y_c = Y.astype(cdt)
    x_c = X.astype(cdt)

    # ---------------- pass 1: fused QKV projection -------------------------
    seq_spec = lambda blk: pl.BlockSpec((1, blk, C), lambda b, i: (b, i, 0))
    proj_cost = pl.CostEstimate(
        flops=int(6 * B * T * C * C),
        transcendentals=0,
        bytes_accessed=int((5 * B * T * C + 3 * C * C) * cs))
    k_all, q_all, v_all = pl.pallas_call(
        functools.partial(_qkv_proj_kernel, n_embd=C),
        out_shape=[jax.ShapeDtypeStruct((B, T, C), cdt)] * 3,
        grid_spec=pltpu.PrefetchScalarGridSpec(
            num_scalar_prefetch=0,
            grid=(B, T // tp),
            in_specs=[
                seq_spec(tp),                                     # Y block
                seq_spec(tp),                                     # X block
                pl.BlockSpec((C, 2 * C), lambda b, i: (0, 0)),    # [Wk|Wq*scale]
                pl.BlockSpec((C, C), lambda b, i: (0, 0)),        # Wv
            ],
            out_specs=[seq_spec(tp)] * 3,                         # K, Q, V
        ),
        compiler_params=pltpu.CompilerParams(
            dimension_semantics=("parallel", "parallel"),
            vmem_limit_bytes=_clamp_limit(_proj_vmem_bytes(tp, C, cs), cap)),
        cost_estimate=proj_cost,
    )(y_c, x_c, w_kq, w_v)

    # ---------------- pass 2: flash attention + output projection ----------
    q_spec = pl.BlockSpec((1, tq, C), lambda b, qi, ki: (b, qi, 0))
    kv_spec = pl.BlockSpec((1, tk, C), lambda b, qi, ki: (b, ki, 0))
    attn_cost = pl.CostEstimate(
        flops=int(4 * B * T * T * C + 2 * B * T * C * C),
        transcendentals=int(B * H * T * T),
        bytes_accessed=int((B * T * C * (1 + 2 * (T // tq)) + C * C) * cs
                           + B * T * C * osz))
    out = pl.pallas_call(
        functools.partial(_flash_attn_kernel, num_heads=H, head_size=hs),
        out_shape=jax.ShapeDtypeStruct((B, T, C), out_dtype),
        grid_spec=pltpu.PrefetchScalarGridSpec(
            num_scalar_prefetch=0,
            grid=(B, T // tq, T // tk),
            in_specs=[q_spec, kv_spec, kv_spec,
                      pl.BlockSpec((C, C), lambda b, qi, ki: (0, 0))],  # Wp
            out_specs=pl.BlockSpec((1, tq, C), lambda b, qi, ki: (b, qi, 0)),
            scratch_shapes=[
                pltpu.VMEM((H, tq, 128), jnp.float32),  # running max (replicated)
                pltpu.VMEM((H, tq, 128), jnp.float32),  # running sum (replicated)
                pltpu.VMEM((H, tq, hs), jnp.float32),   # unnormalized O per head
                pltpu.VMEM((tq, C), cdt),               # concat_h(O_h) buffer
            ],
        ),
        compiler_params=pltpu.CompilerParams(
            dimension_semantics=("parallel", "parallel", "arbitrary"),
            vmem_limit_bytes=_clamp_limit(
                _flash_vmem_bytes(tq, tk, C, H, hs, cs, osz), cap)),
        cost_estimate=attn_cost,
    )(q_all, k_all, v_all, w_p)
    return out


# ---------------------------------------------------------------------------
# Pure-JAX reference (mirrors the PyTorch forward in eval mode).
# ---------------------------------------------------------------------------
def multica_reference(Y, X, wq, wk, wv, wp, *, num_heads):
    B, T, C = X.shape
    hs = C // num_heads
    hp = jax.lax.Precision.HIGHEST
    K = jnp.dot(Y, wk, precision=hp)
    Q = jnp.dot(Y, wq, precision=hp)
    V = jnp.dot(X, wv, precision=hp)

    def split_heads(a):
        return a.reshape(B, T, num_heads, hs).transpose(0, 2, 1, 3)  # (B,H,T,hs)

    Kh, Qh, Vh = split_heads(K), split_heads(Q), split_heads(V)
    W = jnp.einsum("bhtd,bhsd->bhts", Qh, Kh, precision=hp) * (C ** -0.5)
    W = jax.nn.softmax(W, axis=-1)
    O = jnp.einsum("bhts,bhsd->bhtd", W, Vh, precision=hp)
    O = O.transpose(0, 2, 1, 3).reshape(B, T, C)
    return jnp.dot(O, wp, precision=hp)


if __name__ == "__main__":
    # Small config consistent with the module: n_embd % num_heads == 0.
    B, T, C, NH = 2, 8, 32, 4

    key = jax.random.PRNGKey(0)
    k_y, k_x, k_wq, k_wk, k_wv, k_wp = jax.random.split(key, 6)

    Y = jax.random.normal(k_y, (B, T, C), dtype=jnp.float32)
    X = jax.random.normal(k_x, (B, T, C), dtype=jnp.float32)

    # Deterministic synthetic weights, stored (in, out).
    wq = jax.random.normal(k_wq, (C, C), dtype=jnp.float32) * (C ** -0.5)
    wk = jax.random.normal(k_wk, (C, C), dtype=jnp.float32) * (C ** -0.5)
    wv = jax.random.normal(k_wv, (C, C), dtype=jnp.float32) * (C ** -0.5)
    wp = jax.random.normal(k_wp, (C, C), dtype=jnp.float32) * (C ** -0.5)

    ref = multica_reference(Y, X, wq, wk, wv, wp, num_heads=NH)

    # (1) f32 compute path: semantic check against the pure-JAX reference.
    out_f32 = multica_forward(Y, X, wq, wk, wv, wp, num_heads=NH,
                              compute_dtype=jnp.float32)
    out_f32 = jax.block_until_ready(out_f32)
    assert out_f32.shape == (B, T, C)
    err_f32 = float(jnp.max(jnp.abs(out_f32 - ref)))
    assert jnp.allclose(out_f32, ref, atol=2e-2, rtol=2e-2), \
        f"f32-path max err {err_f32}"

    # (2) Default bf16 MXU-operand path (performance configuration): sanity.
    out_bf16 = multica_forward(Y, X, wq, wk, wv, wp, num_heads=NH)
    out_bf16 = jax.block_until_ready(out_bf16)
    assert out_bf16.shape == (B, T, C)
    assert bool(jnp.all(jnp.isfinite(out_bf16)))
    err_bf16 = float(jnp.max(jnp.abs(out_bf16.astype(jnp.float32) - ref)))
    assert err_bf16 < 0.25, f"bf16-path max err {err_bf16}"

    print("KERNEL_OK")
</pallas_src>

<mosaic_0001>
module attributes {stable_mosaic.version = 11 : i64} {
  func.func @_qkv_proj_kernel(%arg0: i32, %arg1: i32, %arg2: memref<1x8x32xf32, #tpu.memory_space<vmem>>, %arg3: memref<1x8x32xf32, #tpu.memory_space<vmem>>, %arg4: memref<32x64xf32, #tpu.memory_space<vmem>>, %arg5: memref<32x32xf32, #tpu.memory_space<vmem>>, %arg6: memref<1x8x32xf32, #tpu.memory_space<vmem>>, %arg7: memref<1x8x32xf32, #tpu.memory_space<vmem>>, %arg8: memref<1x8x32xf32, #tpu.memory_space<vmem>>) attributes {dimension_semantics = [#tpu.dimension_semantics<parallel>, #tpu.dimension_semantics<parallel>], iteration_bounds = array<i64: 2, 1>, scalar_prefetch = 0 : i64, scratch_operands = 0 : i64, tpu.core_type = #tpu.core_type<tc>, window_params = [{transform_indices = @transform_0, window_bounds = array<i64: 1, 8, 32>}, {transform_indices = @transform_1, window_bounds = array<i64: 1, 8, 32>}, {pipeline_mode = #tpu.pipeline_mode<synchronous>, transform_indices = @transform_2, window_bounds = array<i64: 32, 64>}, {pipeline_mode = #tpu.pipeline_mode<synchronous>, transform_indices = @transform_3, window_bounds = array<i64: 32, 32>}, {transform_indices = @transform_4, window_bounds = array<i64: 1, 8, 32>}, {transform_indices = @transform_5, window_bounds = array<i64: 1, 8, 32>}, {transform_indices = @transform_6, window_bounds = array<i64: 1, 8, 32>}]} {
    %c0 = arith.constant 0 : index
    %c0_0 = arith.constant 0 : index
    %c0_1 = arith.constant 0 : index
    %0 = vector.load %arg2[%c0, %c0_0, %c0_1] : memref<1x8x32xf32, #tpu.memory_space<vmem>>, vector<1x8x32xf32>
    %1 = vector.shape_cast %0 : vector<1x8x32xf32> to vector<8x32xf32>
    %c0_2 = arith.constant 0 : index
    %c0_3 = arith.constant 0 : index
    %2 = vector.load %arg4[%c0_2, %c0_3] : memref<32x64xf32, #tpu.memory_space<vmem>>, vector<32x64xf32>
    %cst = arith.constant dense<0.000000e+00> : vector<8x64xf32>
    %3 = tpu.matmul %1, %2, %cst {dimension_numbers = #tpu.dot_dimension_numbers<[1], [0], [0], [1], [0, 0, 1, 1], [], []>} : vector<8x32xf32>, vector<32x64xf32>, vector<8x64xf32> -> vector<8x64xf32>
    %4 = vector.extract_strided_slice %3 {offsets = [0, 0], sizes = [8, 32], strides = [1, 1]} : vector<8x64xf32> to vector<8x32xf32>
    %c0_4 = arith.constant 0 : index
    %c0_5 = arith.constant 0 : index
    %c0_6 = arith.constant 0 : index
    %5 = vector.load %arg6[%c0_4, %c0_5, %c0_6] : memref<1x8x32xf32, #tpu.memory_space<vmem>>, vector<1x8x32xf32>
    %6 = vector.shape_cast %5 : vector<1x8x32xf32> to vector<8x32xf32>
    %7 = vector.shape_cast %4 : vector<8x32xf32> to vector<1x8x32xf32>
    tpu.vector_store %arg6[%c0_4, %c0_5, %c0_6], %7 {strides = array<i32>} : memref<1x8x32xf32, #tpu.memory_space<vmem>>, vector<1x8x32xf32>,
    %8 = vector.extract_strided_slice %3 {offsets = [0, 32], sizes = [8, 32], strides = [1, 1]} : vector<8x64xf32> to vector<8x32xf32>
    %c0_7 = arith.constant 0 : index
    %c0_8 = arith.constant 0 : index
    %c0_9 = arith.constant 0 : index
    %9 = vector.load %arg7[%c0_7, %c0_8, %c0_9] : memref<1x8x32xf32, #tpu.memory_space<vmem>>, vector<1x8x32xf32>
    %10 = vector.shape_cast %9 : vector<1x8x32xf32> to vector<8x32xf32>
    %11 = vector.shape_cast %8 : vector<8x32xf32> to vector<1x8x32xf32>
    tpu.vector_store %arg7[%c0_7, %c0_8, %c0_9], %11 {strides = array<i32>} : memref<1x8x32xf32, #tpu.memory_space<vmem>>, vector<1x8x32xf32>,
    %c0_10 = arith.constant 0 : index
    %c0_11 = arith.constant 0 : index
    %c0_12 = arith.constant 0 : index
    %12 = vector.load %arg3[%c0_10, %c0_11, %c0_12] : memref<1x8x32xf32, #tpu.memory_space<vmem>>, vector<1x8x32xf32>
    %13 = vector.shape_cast %12 : vector<1x8x32xf32> to vector<8x32xf32>
    %c0_13 = arith.constant 0 : index
    %c0_14 = arith.constant 0 : index
    %14 = vector.load %arg5[%c0_13, %c0_14] : memref<32x32xf32, #tpu.memory_space<vmem>>, vector<32x32xf32>
    %cst_15 = arith.constant dense<0.000000e+00> : vector<8x32xf32>
    %15 = tpu.matmul %13, %14, %cst_15 {dimension_numbers = #tpu.dot_dimension_numbers<[1], [0], [0], [1], [0, 0, 1, 1], [], []>} : vector<8x32xf32>, vector<32x32xf32>, vector<8x32xf32> -> vector<8x32xf32>
    %c0_16 = arith.constant 0 : index
    %c0_17 = arith.constant 0 : index
    %c0_18 = arith.constant 0 : index
    %16 = vector.load %arg8[%c0_16, %c0_17, %c0_18] : memref<1x8x32xf32, #tpu.memory_space<vmem>>, vector<1x8x32xf32>
    %17 = vector.shape_cast %16 : vector<1x8x32xf32> to vector<8x32xf32>
    %18 = vector.shape_cast %15 : vector<8x32xf32> to vector<1x8x32xf32>
    tpu.vector_store %arg8[%c0_16, %c0_17, %c0_18], %18 {strides = array<i32>} : memref<1x8x32xf32, #tpu.memory_space<vmem>>, vector<1x8x32xf32>,
    return
  }
  func.func @transform_0(%arg0: i32, %arg1: i32) -> (i32, i32, i32) {
    %c0_i32 = arith.constant 0 : i32
    %c0_i32_0 = arith.constant 0 : i32
    return %arg0, %arg1, %c0_i32 : i32, i32, i32
  }
  func.func @transform_1(%arg0: i32, %arg1: i32) -> (i32, i32, i32) {
    %c0_i32 = arith.constant 0 : i32
    %c0_i32_0 = arith.constant 0 : i32
    return %arg0, %arg1, %c0_i32 : i32, i32, i32
  }
  func.func @transform_2(%arg0: i32, %arg1: i32) -> (i32, i32) {
    %c0_i32 = arith.constant 0 : i32
    %c0_i32_0 = arith.constant 0 : i32
    %c0_i32_1 = arith.constant 0 : i32
    return %c0_i32, %c0_i32_0 : i32, i32
  }
  func.func @transform_3(%arg0: i32, %arg1: i32) -> (i32, i32) {
    %c0_i32 = arith.constant 0 : i32
    %c0_i32_0 = arith.constant 0 : i32
    %c0_i32_1 = arith.constant 0 : i32
    return %c0_i32, %c0_i32_0 : i32, i32
  }
  func.func @transform_4(%arg0: i32, %arg1: i32) -> (i32, i32, i32) {
    %c0_i32 = arith.constant 0 : i32
    %c0_i32_0 = arith.constant 0 : i32
    return %arg0, %arg1, %c0_i32 : i32, i32, i32
  }
  func.func @transform_5(%arg0: i32, %arg1: i32) -> (i32, i32, i32) {
    %c0_i32 = arith.constant 0 : i32
    %c0_i32_0 = arith.constant 0 : i32
    return %arg0, %arg1, %c0_i32 : i32, i32, i32
  }
  func.func @transform_6(%arg0: i32, %arg1: i32) -> (i32, i32, i32) {
    %c0_i32 = arith.constant 0 : i32
    %c0_i32_0 = arith.constant 0 : i32
    return %arg0, %arg1, %c0_i32 : i32, i32, i32
  }
}

</mosaic_0001>

<llo_original>
// kernel: tpu_custom_call.1
$region0: #{tpu_custom_call.1}
  #allocation0 [shape = 'u32[]', space=smem, size = 0x4, offset = 0x4, fixed_abs, tag = 'smem constant byte address 0x4 - core index']
  #allocation1 [shape = 'u32[144,128]{1,0:T(1,128)}', space=vmem, size = 0x12000, scoped, tag = 'internal scratch']
  %s0 = inlined_call_operand.hbm [shape: f32[2,8,32], index: 0, kind: input, shape index: {}]
  %s1 = inlined_call_operand.hbm [shape: f32[2,8,32], index: 1, kind: input, shape index: {}]
  %s2 = inlined_call_operand.hbm [shape: f32[32,64], index: 2, kind: input, shape index: {}]
  %s3 = inlined_call_operand.hbm [shape: f32[32,32], index: 3, kind: input, shape index: {}]
  %s4 = inlined_call_operand.hbm [shape: f32[2,8,32], index: 4, kind: output, shape index: {0}]
  %s5 = inlined_call_operand.hbm [shape: f32[2,8,32], index: 5, kind: output, shape index: {1}]
  %s6 = inlined_call_operand.hbm [shape: f32[2,8,32], index: 6, kind: output, shape index: {2}]
  %7 = xla_tuple %s4, %s5, %s6
  %s8 = sld [smem:[#allocation0]]
  $region81: #{tpu_custom_call.1} parent=0
    _
  %s10 = ssub.s32 1, %s8
  %s11 = scalar_select 0, %s10, %s8
  $region1: #{tpu_custom_call.1} parent=0
    #allocation2 [shape = 'u8[8192]{0}', space=vmem, size = 0x2000, scoped, tag = 'input window, operand 0']
    #allocation3 [shape = 's32[2]{0}', space=sflag, size = 0x8, scoped, tag = 'scoped memory for tpu_custom_call.1']
    #allocation4 [shape = 's32[2]{0}', space=sflag, size = 0x8, scoped, tag = 'scoped memory for tpu_custom_call.1']
    #allocation5 [shape = 'u8[8192]{0}', space=vmem, size = 0x2000, scoped, tag = 'input window, operand 1']
    #allocation6 [shape = 's32[2]{0}', space=sflag, size = 0x8, scoped, tag = 'scoped memory for tpu_custom_call.1']
    #allocation7 [shape = 'u8[16384]{0}', space=vmem, size = 0x4000, scoped, tag = 'input window, operand 2, single buffered']
    #allocation8 [shape = 'u8[16384]{0}', space=vmem, size = 0x4000, scoped, tag = 'input window, operand 3, single buffered']
    #allocation9 [shape = 's32[1]{0}', space=sflag, size = 0x4, scoped, tag = 'scoped memory for tpu_custom_call.1']
    #allocation10 [shape = 'u8[8192]{0}', space=vmem, size = 0x2000, scoped, tag = 'output window, operand 0']
    #allocation11 [shape = 'u8[8192]{0}', space=vmem, size = 0x2000, scoped, tag = 'output window, operand 1']
    #allocation12 [shape = 's32[2]{0}', space=sflag, size = 0x8, scoped, tag = 'scoped memory for tpu_custom_call.1']
    #allocation13 [shape = 'u8[8192]{0}', space=vmem, size = 0x2000, scoped, tag = 'output window, operand 2']
    %12 = vsyncpa [#allocation3], 0
    %s13 = scalar_lea.sflag [#allocation3], 1
    %14 = vsyncpa %s13, 0
    %15 = vsyncpa [#allocation6], 0
    %s16 = scalar_lea.sflag [#allocation6], 1
    %17 = vsyncpa %s16, 0
    %18 = vsyncpa [#allocation9], 0
    %19 = vsyncpa [#allocation4], 0
    %s20 = scalar_lea.sflag [#allocation4], 1
    %21 = vsyncpa %s20, 0
    %22 = vsyncpa [#allocation12], 0
    %s23 = scalar_lea.sflag [#allocation12], 1
    %24 = vsyncpa %s23, 0
    loop: start=0, step=1, limit=4
    $region2: #{tpu_custom_call.1} parent=1 // loop_pre_header
      _
    $region3: #{tpu_custom_call.1} parent=1 // loop_header
      %s26 = sphi 0, %s30
      %p27 = scmp.ge.s32.totalorder %s26, 4
      %s33 = sphi 0, %s45
      %s34 = sphi 0, %s41
      %s35 = sphi 0, %s33
      %s36 = sphi 0, %s34
      %s37 = sphi 0, %s35
      %s38 = sphi 0, %s36
      %s50 = sphi 0, %s52
      %s53 = sphi 0, %s50
      %s54 = sphi 0, %s53
      %s70 = sphi 0, %s54
      %s78 = sphi 0, %s80
      %s81 = sphi 0, %s78
      %s82 = sphi 0, %s81
      %s98 = sphi 0, %s82
      %s102 = sphi 0, %s102
      %s104 = sphi 0, %s102
      %s105 = sphi 0, %s104
      %s119 = sphi 0, %s105
      %s123 = sphi 0, %s123
      %s125 = sphi 0, %s123
      %s126 = sphi 0, %s125
      %s140 = sphi 0, %s126
      %s148 = sphi 0, %s150
      %s151 = sphi 0, %s148
      %s152 = sphi 0, %s151
      %s168 = sphi 0, %s152
      %s176 = sphi 0, %s178
      %s179 = sphi 0, %s176
      %s180 = sphi 0, %s179
      %s196 = sphi 0, %s180
      %s204 = sphi 0, %s206
      %s207 = sphi 0, %s204
      %s208 = sphi 0, %s207
      %s224 = sphi 0, %s208
    $region4: #{tpu_custom_call.1} parent=1 // loop_header_branch
      %29 = sbr.rel (%p27) target = $region8
    $region5: #{tpu_custom_call.1} parent=1 // loop_body
      %s31 = ssub.s32 %s26, 1
      %s32 = ssub.s32 %s26, 2
      %s39 = sadd.s32 1, %s34
      %p40 = scmp.ge.s32.totalorder %s39, 1
      %s41 = scalar_select %p40, 0, %s39
      %s42 = sadd.s32 1, %s33
      %s43 = scalar_select %p40, %s42, %s33
      %p44 = scmp.ge.s32.totalorder %s43, 2
      %s45 = scalar_select %p44, 0, %s43
      %s46 = ssub.s32 %s33, %s45
      %s47 = ssub.s32 %s34, %s41
      %s48 = sor.u32 %s46, %s47
      %p49 = scmp.eq.s32.totalorder %s48, 0
      %s51 = sadd.s32 %s50, 1
      %s52 = scalar_select %p49, %s50, %s51
      %p55 = pneg %p49
      %p56 = scmp.eq.s32.totalorder %s26, 1
      %p57 = por %p55, %p56
      %p58 = scmp.ne.s32.totalorder %s50, %s53
      %p59 = scmp.eq.s32.totalorder %s26, 0
      %p60 = por %p58, %p59
      %p61 = scmp.ne.s32.totalorder %s50, %s53
      %p62 = scmp.eq.s32.totalorder %s31, 1
      %p63 = por %p61, %p62
      %p64 = scmp.ne.s32.totalorder %s53, %s54
      %p65 = scmp.eq.s32.totalorder %s31, 0
      %p66 = por %p64, %p65
      %p67 = scmp.ne.s32.totalorder %s53, %s54
      %p68 = scmp.eq.s32.totalorder %s32, 1
      %p69 = por %p67, %p68
      %p71 = scmp.ne.s32.totalorder %s54, %s70
      %p72 = scmp.eq.s32.totalorder %s32, 0
      %p73 = por %p71, %p72
      %s74 = ssub.s32 %s33, %s45
      %s75 = ssub.s32 %s34, %s41
      %s76 = sor.u32 %s74, %s75
      %p77 = scmp.eq.s32.totalorder %s76, 0
      %s79 = sadd.s32 %s78, 1
      %s80 = scalar_select %p77, %s78, %s79
      %p83 = pneg %p77
      %p84 = scmp.eq.s32.totalorder %s26, 1
      %p85 = por %p83, %p84
      %p86 = scmp.ne.s32.totalorder %s78, %s81
      %p87 = scmp.eq.s32.totalorder %s26, 0
      %p88 = por %p86, %p87
      %p89 = scmp.ne.s32.totalorder %s78, %s81
      %p90 = scmp.eq.s32.totalorder %s31, 1
      %p91 = por %p89, %p90
      %p92 = scmp.ne.s32.totalorder %s81, %s82
      %p93 = scmp.eq.s32.totalorder %s31, 0
      %p94 = por %p92, %p93
      %p95 = scmp.ne.s32.totalorder %s81, %s82
      %p96 = scmp.eq.s32.totalorder %s32, 1
      %p97 = por %p95, %p96
      %p99 = scmp.ne.s32.totalorder %s82, %s98
      %p100 = scmp.eq.s32.totalorder %s32, 0
      %p101 = por %p99, %p100
      %s103 = sadd.s32 %s102, 1
      %p106 = scmp.eq.s32.totalorder %s26, 1
      %p107 = scmp.ne.s32.totalorder %s102, %s104
      %p108 = scmp.eq.s32.totalorder %s26, 0
      %p109 = por %p107, %p108
      %p110 = scmp.ne.s32.totalorder %s102, %s104
      %p111 = scmp.eq.s32.totalorder %s31, 1
      %p112 = por %p110, %p111
      %p113 = scmp.ne.s32.totalorder %s104, %s105
      %p114 = scmp.eq.s32.totalorder %s31, 0
      %p115 = por %p113, %p114
      %p116 = scmp.ne.s32.totalorder %s104, %s105
      %p117 = scmp.eq.s32.totalorder %s32, 1
      %p118 = por %p116, %p117
      %p120 = scmp.ne.s32.totalorder %s105, %s119
      %p121 = scmp.eq.s32.totalorder %s32, 0
      %p122 = por %p120, %p121
      %s124 = sadd.s32 %s123, 1
      %p127 = scmp.eq.s32.totalorder %s26, 1
      %p128 = scmp.ne.s32.totalorder %s123, %s125
      %p129 = scmp.eq.s32.totalorder %s26, 0
      %p130 = por %p128, %p129
      %p131 = scmp.ne.s32.totalorder %s123, %s125
      %p132 = scmp.eq.s32.totalorder %s31, 1
      %p133 = por %p131, %p132
      %p134 = scmp.ne.s32.totalorder %s125, %s126
      %p135 = scmp.eq.s32.totalorder %s31, 0
      %p136 = por %p134, %p135
      %p137 = scmp.ne.s32.totalorder %s125, %s126
      %p138 = scmp.eq.s32.totalorder %s32, 1
      %p139 = por %p137, %p138
      %p141 = scmp.ne.s32.totalorder %s126, %s140
      %p142 = scmp.eq.s32.totalorder %s32, 0
      %p143 = por %p141, %p142
      %s144 = ssub.s32 %s33, %s45
      %s145 = ssub.s32 %s34, %s41
      %s146 = sor.u32 %s144, %s145
      %p147 = scmp.eq.s32.totalorder %s146, 0
      %s149 = sadd.s32 %s148, 1
      %s150 = scalar_select %p147, %s148, %s149
      %p153 = pneg %p147
      %p154 = scmp.eq.s32.totalorder %s26, 1
      %p155 = por %p153, %p154
      %p156 = scmp.ne.s32.totalorder %s148, %s151
      %p157 = scmp.eq.s32.totalorder %s26, 0
      %p158 = por %p156, %p157
      %p159 = scmp.ne.s32.totalorder %s148, %s151
      %p160 = scmp.eq.s32.totalorder %s31, 1
      %p161 = por %p159, %p160
      %p162 = scmp.ne.s32.totalorder %s151, %s152
      %p163 = scmp.eq.s32.totalorder %s31, 0
      %p164 = por %p162, %p163
      %p165 = scmp.ne.s32.totalorder %s151, %s152
      %p166 = scmp.eq.s32.totalorder %s32, 1
      %p167 = por %p165, %p166
      %p169 = scmp.ne.s32.totalorder %s152, %s168
      %p170 = scmp.eq.s32.totalorder %s32, 0
      %p171 = por %p169, %p170
      %s172 = ssub.s32 %s33, %s45
      %s173 = ssub.s32 %s34, %s41
      %s174 = sor.u32 %s172, %s173
      %p175 = scmp.eq.s32.totalorder %s174, 0
      %s177 = sadd.s32 %s176, 1
      %s178 = scalar_select %p175, %s176, %s177
      %p181 = pneg %p175
      %p182 = scmp.eq.s32.totalorder %s26, 1
      %p183 = por %p181, %p182
      %p184 = scmp.ne.s32.totalorder %s176, %s179
      %p185 = scmp.eq.s32.totalorder %s26, 0
      %p186 = por %p184, %p185
      %p187 = scmp.ne.s32.totalorder %s176, %s179
      %p188 = scmp.eq.s32.totalorder %s31, 1
      %p189 = por %p187, %p188
      %p190 = scmp.ne.s32.totalorder %s179, %s180
      %p191 = scmp.eq.s32.totalorder %s31, 0
      %p192 = por %p190, %p191
      %p193 = scmp.ne.s32.totalorder %s179, %s180
      %p194 = scmp.eq.s32.totalorder %s32, 1
      %p195 = por %p193, %p194
      %p197 = scmp.ne.s32.totalorder %s180, %s196
      %p198 = scmp.eq.s32.totalorder %s32, 0
      %p199 = por %p197, %p198
      %s200 = ssub.s32 %s33, %s45
      %s201 = ssub.s32 %s34, %s41
      %s202 = sor.u32 %s200, %s201
      %p203 = scmp.eq.s32.totalorder %s202, 0
      %s205 = sadd.s32 %s204, 1
      %s206 = scalar_select %p203, %s204, %s205
      %p209 = pneg %p203
      %p210 = scmp.eq.s32.totalorder %s26, 1
      %p211 = por %p209, %p210
      %p212 = scmp.ne.s32.totalorder %s204, %s207
      %p213 = scmp.eq.s32.totalorder %s26, 0
      %p214 = por %p212, %p213
      %p215 = scmp.ne.s32.totalorder %s204, %s207
      %p216 = scmp.eq.s32.totalorder %s31, 1
      %p217 = por %p215, %p216
      %p218 = scmp.ne.s32.totalorder %s207, %s208
      %p219 = scmp.eq.s32.totalorder %s31, 0
      %p220 = por %p218, %p219
      %p221 = scmp.ne.s32.totalorder %s207, %s208
      %p222 = scmp.eq.s32.totalorder %s32, 1
      %p223 = por %p221, %p222
      %p225 = scmp.ne.s32.totalorder %s208, %s224
      %p226 = scmp.eq.s32.totalorder %s32, 0
      %p227 = por %p225, %p226
      %p228 = scmp.le.s32.totalorder 1, %s26
      %p229 = scmp.lt.s32.totalorder %s26, 3
      %p230 = pnand %p228, %p229
      %p231 = pneg %p230
      // Predicated region
      $region9: #{tpu_custom_call.1} parent=5 // pred_check
        _
      $region10: #{tpu_custom_call.1} parent=5 // pred_check_branch
        %233 = sbr.rel (%p230) target = $region12
      $region11: #{tpu_custom_call.1} parent=5 // pred_region
        %s234 = ssub.s32 %s26, 1
        // Predicated region
        $region13: #{tpu_custom_call.1} parent=11 // pred_check
          %p235 = pneg %p115
        $region14: #{tpu_custom_call.1} parent=11 // pred_check_branch
          %237 = sbr.rel (%p235) target = $region16
        $region15: #{tpu_custom_call.1} parent=11 // pred_region
          %s239 = ssub.s32 512, 512
          %240 = vsyncadd [#allocation6], %s239
          %s241 = sshll.u32 [#allocation7], 4
          %s242 = int_to_ptr.vmem [resolvable:$true] %s241
          %247 = dma.hbm_to_vmem [thread:$0]  %s2, 512, %s242, [#allocation6], 128, 128, 8
        $region16: #{tpu_custom_call.1} parent=11 // pred_fallthru
          _
        // Predicated region
        $region17: #{tpu_custom_call.1} parent=11 // pred_check
          %p248 = pneg %p136
        $region18: #{tpu_custom_call.1} parent=11 // pred_check_branch
          %250 = sbr.rel (%p248) target = $region20
        $region19: #{tpu_custom_call.1} parent=11 // pred_region
          %s252 = ssub.s32 512, 512
          %253 = vsyncadd [#allocation9], %s252
          %s254 = sshll.u32 [#allocation8], 4
          %s255 = int_to_ptr.vmem [resolvable:$true] %s254
          %260 = dma.hbm_to_vmem [thread:$0]  %s3, 512, %s255, [#allocation9], 128, 128, 8
        $region20: #{tpu_custom_call.1} parent=11 // pred_fallthru
          _
      $region12: #{tpu_custom_call.1} parent=5 // pred_fallthru
        _
      %p261 = scmp.lt.s32.totalorder %s26, 2
      // Predicated region
      $region21: #{tpu_custom_call.1} parent=5 // pred_check
        %p262 = pneg %p261
      $region22: #{tpu_custom_call.1} parent=5 // pred_check_branch
        %264 = sbr.rel (%p262) target = $region24
      $region23: #{tpu_custom_call.1} parent=5 // pred_region
        // Predicated region
        $region25: #{tpu_custom_call.1} parent=23 // pred_check
          %p265 = pneg %p60
        $region26: #{tpu_custom_call.1} parent=23 // pred_check_branch
          %267 = sbr.rel (%p265) target = $region28
        $region27: #{tpu_custom_call.1} parent=23 // pred_region
          %s268 = sand.u32 %s50, 1
          %s269 = scalar_lea.sflag [#allocation3], %s268
          %s270 = sand.u32 %s50, 1
          %s271 = smul.addr %s270, 8
          %s272 = scalar_lea.vmem [#allocation2], %s271
          %s274 = ssub.s32 128, 128
          %275 = vsyncadd %s269, %s274
          %s276 = sadd.s32 %s34, %s33
          %s277 = smul.addr %s276, 128
          %s278 = scalar_lea.hbm %s0, %s277
          %s280 = sshll.u32 %s272, 4
          %s281 = int_to_ptr.vmem [resolvable:$true] %s280
          %283 = dma.hbm_to_vmem [thread:$0]  %s278, 128, %s281, %s269
        $region28: #{tpu_custom_call.1} parent=23 // pred_fallthru
          _
        // Predicated region
        $region29: #{tpu_custom_call.1} parent=23 // pred_check
          %p284 = pneg %p88
        $region30: #{tpu_custom_call.1} parent=23 // pred_check_branch
          %286 = sbr.rel (%p284) target = $region32
        $region31: #{tpu_custom_call.1} parent=23 // pred_region
          %s287 = sand.u32 %s26, 1
          %s288 = scalar_lea.sflag [#allocation6], %s287
          %s289 = sand.u32 %s78, 1
          %s290 = smul.addr %s289, 8
          %s291 = scalar_lea.vmem [#allocation5], %s290
          %s293 = ssub.s32 128, 128
          %294 = vsyncadd %s288, %s293
          %s295 = sadd.s32 %s34, %s33
          %s296 = smul.addr %s295, 128
          %s297 = scalar_lea.hbm %s1, %s296
          %s299 = sshll.u32 %s291, 4
          %s300 = int_to_ptr.vmem [resolvable:$true] %s299
          %302 = dma.hbm_to_vmem [thread:$0]  %s297, 128, %s300, %s288
        $region32: #{tpu_custom_call.1} parent=23 // pred_fallthru
          _
      $region24: #{tpu_custom_call.1} parent=5 // pred_fallthru
        _
      %p303 = scmp.le.s32.totalorder 1, %s26
      %p304 = scmp.lt.s32.totalorder %s26, 3
      %p305 = pnand %p303, %p304
      %p306 = pneg %p305
      // Predicated region
      $region33: #{tpu_custom_call.1} parent=5 // pred_check
        _
      $region34: #{tpu_custom_call.1} parent=5 // pred_check_branch
        %308 = sbr.rel (%p305) target = $region36
      $region35: #{tpu_custom_call.1} parent=5 // pred_region
        %s309 = ssub.s32 %s26, 1
        %s310 = sand.u32 %s53, 1
        %s311 = scalar_lea.sflag [#allocation3], %s310
        %s312 = sand.u32 %s53, 1
        %s313 = smul.addr %s312, 8
        %s314 = scalar_lea.vmem [#allocation2], %s313
        // Predicated region
        $region37: #{tpu_custom_call.1} parent=35 // pred_check
          %p315 = pneg %p66
        $region38: #{tpu_custom_call.1} parent=35 // pred_check_branch
          %317 = sbr.rel (%p315) target = $region40
        $region39: #{tpu_custom_call.1} parent=35 // pred_region
          %318 = dma.done %s311, 128
        $region40: #{tpu_custom_call.1} parent=35 // pred_fallthru
          _
        %s319 = sand.u32 %s31, 1
        %s320 = scalar_lea.sflag [#allocation6], %s319
        %s321 = sand.u32 %s81, 1
        %s322 = smul.addr %s321, 8
        %s323 = scalar_lea.vmem [#allocation5], %s322
        // Predicated region
        $region41: #{tpu_custom_call.1} parent=35 // pred_check
          %p324 = pneg %p94
        $region42: #{tpu_custom_call.1} parent=35 // pred_check_branch
          %326 = sbr.rel (%p324) target = $region44
        $region43: #{tpu_custom_call.1} parent=35 // pred_region
          %327 = dma.done %s320, 128
        $region44: #{tpu_custom_call.1} parent=35 // pred_fallthru
          _
        // Predicated region
        $region45: #{tpu_custom_call.1} parent=35 // pred_check
          %p328 = pneg %p115
        $region46: #{tpu_custom_call.1} parent=35 // pred_check_branch
          %330 = sbr.rel (%p328) target = $region48
        $region47: #{tpu_custom_call.1} parent=35 // pred_region
          %331 = dma.done [#allocation6], 512
        $region48: #{tpu_custom_call.1} parent=35 // pred_fallthru
          _
        // Predicated region
        $region49: #{tpu_custom_call.1} parent=35 // pred_check
          %p332 = pneg %p136
        $region50: #{tpu_custom_call.1} parent=35 // pred_check_branch
          %334 = sbr.rel (%p332) target = $region52
        $region51: #{tpu_custom_call.1} parent=35 // pred_region
          %335 = dma.done [#allocation9], 512
        $region52: #{tpu_custom_call.1} parent=35 // pred_fallthru
          _
        %s336 = sand.u32 %s53, 1
        %s337 = scalar_lea.sflag [#allocation3], %s336
        %s338 = sand.u32 %s53, 1
        %s339 = smul.addr %s338, 8
        %s340 = scalar_lea.vmem [#allocation2], %s339
        %p341 = pneg %p66
        %p342 = pneg %p63
        %s343 = sand.u32 %s31, 1
        %s344 = scalar_lea.sflag [#allocation6], %s343
        %s345 = sand.u32 %s81, 1
        %s346 = smul.addr %s345, 8
        %s347 = scalar_lea.vmem [#allocation5], %s346
        %p348 = pneg %p94
        %p349 = pneg %p91
        %p350 = pneg %p115
        %p351 = pneg %p112
        %p352 = pneg %p136
        %p353 = pneg %p133
        %p354 = pneg %p164
        %p355 = pneg %p161
        %s356 = sand.u32 %s151, 1
        %s357 = scalar_lea.sflag [#allocation4], %s356
        %s358 = sand.u32 %s151, 1
        %s359 = smul.addr %s358, 8
        %s360 = scalar_lea.vmem [#allocation10], %s359
        %p361 = pneg %p192
        %p362 = pneg %p189
        %s363 = sand.u32 %s31, 1
        %s364 = scalar_lea.sflag [#allocation12], %s363
        %s365 = sand.u32 %s179, 1
        %s366 = smul.addr %s365, 8
        %s367 = scalar_lea.vmem [#allocation11], %s366
        %p368 = pneg %p220
        %p369 = pneg %p217
        %s370 = sand.u32 %s31, 1
        %s371 = scalar_lea.sflag [#allocation12], %s370
        %s372 = sand.u32 %s207, 1
        %s373 = smul.addr %s372, 8
        %s374 = scalar_lea.vmem [#allocation13], %s373
        %v375 = vld [vmem:[%s314] sm:$0xff]
        %v376 = vld [vmem:[#allocation7] sm:$0xff]
        %v377 = vld [vmem:[#allocation7 + $0x8] sm:$0xff]
        %v378 = vld [vmem:[#allocation7 + $0x10] sm:$0xff]
        %v379 = vld [vmem:[#allocation7 + $0x18] sm:$0xff]
        %vm380 = vcmask 261120
        %v382 = vsel %vm380, %v375, 0
        %384 = vmatprep.subr.mxu0 0.0
        %385 = vmatpush1.msra.mxu0 0.0
        %386 = vmatprep.subr.mxu0 0.0
        %387 = vmatpush1.msra.mxu0 0.0
        %388 = vmatprep.subr.mxu0 0.0
        %389 = vmatpush1.msra.mxu0 0.0
        %390 = vmatprep.subr.mxu0 0.0
        %391 = vmatpush1.msra.mxu0 0.0
        %392 = vmatprep.subr.mxu0 0.0
        %393 = vmatpush1.msra.mxu0 0.0
        %394 = vmatprep.subr.mxu0 0.0
        %395 = vmatpush1.msra.mxu0 0.0
        %396 = vmatprep.subr.mxu0 0.0
        %397 = vmatpush1.msra.mxu0 0.0
        %398 = vmatprep.subr.mxu0 0.0
        %399 = vmatpush1.msra.mxu0 0.0
        %400 = vmatprep.subr.mxu0 0.0
        %401 = vmatpush1.msra.mxu0 0.0
        %402 = vmatprep.subr.mxu0 0.0
        %403 = vmatpush1.msra.mxu0 0.0
        %404 = vmatprep.subr.mxu0 0.0
        %405 = vmatpush1.msra.mxu0 0.0
        %406 = vmatprep.subr.mxu0 0.0
        %407 = vmatpush1.msra.mxu0 0.0
        %408 = vmatprep.subr.mxu0 0.0
        %409 = vmatpush1.msra.mxu0 %v379
        %410 = vmatprep.subr.mxu0 0.0
        %411 = vmatpush1.msra.mxu0 %v378
        %412 = vmatprep.subr.mxu0 0.0
        %413 = vmatpush1.msra.mxu0 %v377
        %414 = vmatprep.subr.mxu0 0.0
        %415 = vmatpush1.msra.mxu0 %v376
        %416 = vmatprep.subr.mxu0 0.0
        %417 = vmatpush2.msra.mxu0 0.0
        %418 = vmatprep.subr.mxu0 0.0
        %419 = vmatpush2.msra.mxu0 0.0
        %420 = vmatprep.subr.mxu0 0.0
        %421 = vmatpush2.msra.mxu0 0.0
        %422 = vmatprep.subr.mxu0 0.0
        %423 = vmatpush2.msra.mxu0 0.0
        %424 = vmatprep.subr.mxu0 0.0
        %425 = vmatpush2.msra.mxu0 0.0
        %426 = vmatprep.subr.mxu0 0.0
        %427 = vmatpush2.msra.mxu0 0.0
        %428 = vmatprep.subr.mxu0 0.0
        %429 = vmatpush2.msra.mxu0 0.0
        %430 = vmatprep.subr.mxu0 0.0
        %431 = vmatpush2.msra.mxu0 0.0
        %432 = vmatprep.subr.mxu0 0.0
        %433 = vmatpush2.msra.mxu0 0.0
        %434 = vmatprep.subr.mxu0 0.0
        %435 = vmatpush2.msra.mxu0 0.0
        %436 = vmatprep.subr.mxu0 0.0
        %437 = vmatpush2.msra.mxu0 0.0
        %438 = vmatprep.subr.mxu0 0.0
        %439 = vmatpush2.msra.mxu0 0.0
        %440 = vmatprep.subr.mxu0 0.0
        %441 = vmatpush2.msra.mxu0 0.0
        %442 = vmatprep.subr.mxu0 0.0
        %443 = vmatpush2.msra.mxu0 0.0
        %444 = vmatprep.subr.mxu0 0.0
        %445 = vmatpush2.msra.mxu0 0.0
        %446 = vmatprep.subr.mxu0 0.0
        %447 = vmatpush2.msra.mxu0 0.0
        %448 = vmatprep.mubr.f32.mxu0 0.0
        %449 = vmatmul.mubr.f32.gmra.mxu0 %v382
        %v450 = vpop.f32.mrf.mxu0
        %v451 = vadd.f32 0.0, %v450
        %v452 = vpop.f32.mrf.mxu0
        %453 = vdwg.mxu0
        %454 = vst.msk [vmem:[%s360] sm:$0xff] %vm380, %v451
        %456 = vrot.lane.b32.xlu0 %v451, 96
        %v457 = vpop.permute.xlu0 %456
        %459 = vst.msk [vmem:[%s367] sm:$0xff] %vm380, %v457
        %v460 = vld [vmem:[%s323] sm:$0xff]
        %v461 = vld [vmem:[#allocation8] sm:$0xff]
        %v462 = vld [vmem:[#allocation8 + $0x8] sm:$0xff]
        %v463 = vld [vmem:[#allocation8 + $0x10] sm:$0xff]
        %v464 = vld [vmem:[#allocation8 + $0x18] sm:$0xff]
        %v466 = vsel %vm380, %v460, 0
        %468 = vmatprep.subr.mxu0 0.0
        %469 = vmatpush1.msra.mxu0 0.0
        %470 = vmatprep.subr.mxu0 0.0
        %471 = vmatpush1.msra.mxu0 0.0
        %472 = vmatprep.subr.mxu0 0.0
        %473 = vmatpush1.msra.mxu0 0.0
        %474 = vmatprep.subr.mxu0 0.0
        %475 = vmatpush1.msra.mxu0 0.0
        %476 = vmatprep.subr.mxu0 0.0
        %477 = vmatpush1.msra.mxu0 0.0
        %478 = vmatprep.subr.mxu0 0.0
        %479 = vmatpush1.msra.mxu0 0.0
        %480 = vmatprep.subr.mxu0 0.0
        %481 = vmatpush1.msra.mxu0 0.0
        %482 = vmatprep.subr.mxu0 0.0
        %483 = vmatpush1.msra.mxu0 0.0
        %484 = vmatprep.subr.mxu0 0.0
        %485 = vmatpush1.msra.mxu0 0.0
        %486 = vmatprep.subr.mxu0 0.0
        %487 = vmatpush1.msra.mxu0 0.0
        %488 = vmatprep.subr.mxu0 0.0
        %489 = vmatpush1.msra.mxu0 0.0
        %490 = vmatprep.subr.mxu0 0.0
        %491 = vmatpush1.msra.mxu0 0.0
        %492 = vmatprep.subr.mxu0 0.0
        %493 = vmatpush1.msra.mxu0 %v464
        %494 = vmatprep.subr.mxu0 0.0
        %495 = vmatpush1.msra.mxu0 %v463
        %496 = vmatprep.subr.mxu0 0.0
        %497 = vmatpush1.msra.mxu0 %v462
        %498 = vmatprep.subr.mxu0 0.0
        %499 = vmatpush1.msra.mxu0 %v461
        %500 = vmatprep.subr.mxu0 0.0
        %501 = vmatpush2.msra.mxu0 0.0
        %502 = vmatprep.subr.mxu0 0.0
        %503 = vmatpush2.msra.mxu0 0.0
        %504 = vmatprep.subr.mxu0 0.0
        %505 = vmatpush2.msra.mxu0 0.0
        %506 = vmatprep.subr.mxu0 0.0
        %507 = vmatpush2.msra.mxu0 0.0
        %508 = vmatprep.subr.mxu0 0.0
        %509 = vmatpush2.msra.mxu0 0.0
        %510 = vmatprep.subr.mxu0 0.0
        %511 = vmatpush2.msra.mxu0 0.0
        %512 = vmatprep.subr.mxu0 0.0
        %513 = vmatpush2.msra.mxu0 0.0
        %514 = vmatprep.subr.mxu0 0.0
        %515 = vmatpush2.msra.mxu0 0.0
        %516 = vmatprep.subr.mxu0 0.0
        %517 = vmatpush2.msra.mxu0 0.0
        %518 = vmatprep.subr.mxu0 0.0
        %519 = vmatpush2.msra.mxu0 0.0
        %520 = vmatprep.subr.mxu0 0.0
        %521 = vmatpush2.msra.mxu0 0.0
        %522 = vmatprep.subr.mxu0 0.0
        %523 = vmatpush2.msra.mxu0 0.0
        %524 = vmatprep.subr.mxu0 0.0
        %525 = vmatpush2.msra.mxu0 0.0
        %526 = vmatprep.subr.mxu0 0.0
        %527 = vmatpush2.msra.mxu0 0.0
        %528 = vmatprep.subr.mxu0 0.0
        %529 = vmatpush2.msra.mxu0 0.0
        %530 = vmatprep.subr.mxu0 0.0
        %531 = vmatpush2.msra.mxu0 0.0
        %532 = vmatprep.mubr.f32.mxu0 0.0
        %533 = vmatmul.mubr.f32.gmra.mxu0 %v466
        %v534 = vpop.f32.mrf.mxu0
        %v535 = vadd.f32 0.0, %v534
        %v536 = vpop.f32.mrf.mxu0
        %537 = vdwg.mxu0
        %538 = vst.msk [vmem:[%s374] sm:$0xff] %vm380, %v535
        %s539 = sand.u32 %s151, 1
        %s540 = scalar_lea.sflag [#allocation4], %s539
        %s541 = sand.u32 %s151, 1
        %s542 = smul.addr %s541, 8
        %s543 = scalar_lea.vmem [#allocation10], %s542
        %s544 = sand.u32 %s31, 1
        %s545 = scalar_lea.sflag [#allocation12], %s544
        %s546 = sand.u32 %s179, 1
        %s547 = smul.addr %s546, 8
        %s548 = scalar_lea.vmem [#allocation11], %s547
        %s549 = sand.u32 %s31, 1
        %s550 = scalar_lea.sflag [#allocation12], %s549
        %s551 = sand.u32 %s207, 1
        %s552 = smul.addr %s551, 8
        %s553 = scalar_lea.vmem [#allocation13], %s552
        // Predicated region
        $region53: #{tpu_custom_call.1} parent=35 // pred_check
          %p554 = pneg %p161
        $region54: #{tpu_custom_call.1} parent=35 // pred_check_branch
          %556 = sbr.rel (%p554) target = $region56
        $region55: #{tpu_custom_call.1} parent=35 // pred_region
          %s558 = ssub.s32 128, 128
          %559 = vsyncadd %s540, %s558
          %s560 = sadd.s32 %s36, %s35
          %s561 = smul.addr %s560, 128
          %s562 = scalar_lea.hbm %s4, %s561
          %s564 = sshll.u32 %s543, 4
          %s565 = int_to_ptr.vmem [resolvable:$true] %s564
          %567 = dma.vmem_to_hbm [thread:$0]  %s565, 128, %s562, %s540
        $region56: #{tpu_custom_call.1} parent=35 // pred_fallthru
          _
        // Predicated region
        $region57: #{tpu_custom_call.1} parent=35 // pred_check
          %p568 = pneg %p189
        $region58: #{tpu_custom_call.1} parent=35 // pred_check_branch
          %570 = sbr.rel (%p568) target = $region60
        $region59: #{tpu_custom_call.1} parent=35 // pred_region
          %s572 = ssub.s32 128, 128
          %573 = vsyncadd %s545, %s572
          %s574 = sadd.s32 %s36, %s35
          %s575 = smul.addr %s574, 128
          %s576 = scalar_lea.hbm %s5, %s575
          %s578 = sshll.u32 %s548, 4
          %s579 = int_to_ptr.vmem [resolvable:$true] %s578
          %581 = dma.vmem_to_hbm [thread:$0]  %s579, 128, %s576, %s545
        $region60: #{tpu_custom_call.1} parent=35 // pred_fallthru
          _
        // Predicated region
        $region61: #{tpu_custom_call.1} parent=35 // pred_check
          %p582 = pneg %p217
        $region62: #{tpu_custom_call.1} parent=35 // pred_check_branch
          %584 = sbr.rel (%p582) target = $region64
        $region63: #{tpu_custom_call.1} parent=35 // pred_region
          %s586 = ssub.s32 128, 128
          %587 = vsyncadd %s550, %s586
          %s588 = sadd.s32 %s36, %s35
          %s589 = smul.addr %s588, 128
          %s590 = scalar_lea.hbm %s6, %s589
          %s592 = sshll.u32 %s553, 4
          %s593 = int_to_ptr.vmem [resolvable:$true] %s592
          %595 = dma.vmem_to_hbm [thread:$0]  %s593, 128, %s590, %s550
        $region64: #{tpu_custom_call.1} parent=35 // pred_fallthru
          _
      $region36: #{tpu_custom_call.1} parent=5 // pred_fallthru
        _
      %p596 = scmp.le.s32.totalorder 2, %s26
      // Predicated region
      $region65: #{tpu_custom_call.1} parent=5 // pred_check
        %p597 = pneg %p596
      $region66: #{tpu_custom_call.1} parent=5 // pred_check_branch
        %599 = sbr.rel (%p597) target = $region68
      $region67: #{tpu_custom_call.1} parent=5 // pred_region
        %s600 = ssub.s32 %s26, 2
        // Predicated region
        $region69: #{tpu_custom_call.1} parent=67 // pred_check
          %p601 = pneg %p167
        $region70: #{tpu_custom_call.1} parent=67 // pred_check_branch
          %603 = sbr.rel (%p601) target = $region72
        $region71: #{tpu_custom_call.1} parent=67 // pred_region
          %s604 = sand.u32 %s152, 1
          %s605 = scalar_lea.sflag [#allocation4], %s604
          %s606 = sand.u32 %s152, 1
          %s607 = smul.addr %s606, 8
          %s608 = scalar_lea.vmem [#allocation10], %s607
          %609 = dma.done %s605, 128
        $region72: #{tpu_custom_call.1} parent=67 // pred_fallthru
          _
        // Predicated region
        $region73: #{tpu_custom_call.1} parent=67 // pred_check
          %p610 = pneg %p195
        $region74: #{tpu_custom_call.1} parent=67 // pred_check_branch
          %612 = sbr.rel (%p610) target = $region76
        $region75: #{tpu_custom_call.1} parent=67 // pred_region
          %s613 = sand.u32 %s32, 1
          %s614 = scalar_lea.sflag [#allocation12], %s613
          %s615 = sand.u32 %s180, 1
          %s616 = smul.addr %s615, 8
          %s617 = scalar_lea.vmem [#allocation11], %s616
          %618 = dma.done %s614, 128
        $region76: #{tpu_custom_call.1} parent=67 // pred_fallthru
          _
        // Predicated region
        $region77: #{tpu_custom_call.1} parent=67 // pred_check
          %p619 = pneg %p223
        $region78: #{tpu_custom_call.1} parent=67 // pred_check_branch
          %621 = sbr.rel (%p619) target = $region80
        $region79: #{tpu_custom_call.1} parent=67 // pred_region
          %s622 = sand.u32 %s32, 1
          %s623 = scalar_lea.sflag [#allocation12], %s622
          %s624 = sand.u32 %s208, 1
          %s625 = smul.addr %s624, 8
          %s626 = scalar_lea.vmem [#allocation13], %s625
          %627 = dma.done %s623, 128
        $region80: #{tpu_custom_call.1} parent=67 // pred_fallthru
          _
      $region68: #{tpu_custom_call.1} parent=5 // pred_fallthru
        _
    $region6: #{tpu_custom_call.1} parent=1 // loop_footer
      %s30 = sadd.s32 1, %s26
    $region7: #{tpu_custom_call.1} parent=1 // loop_footer_branch
      %25 = sbr.rel target = $region3
    $region8: #{tpu_custom_call.1} parent=1 // loop_exit
      _
    %628 = vsyncpa [#allocation3], 1
    %s629 = scalar_lea.sflag [#allocation3], 1
    %630 = vsyncpa %s629, 1
    %631 = vsyncpa [#allocation6], 1
    %s632 = scalar_lea.sflag [#allocation6], 1
    %633 = vsyncpa %s632, 1
    %634 = vsyncpa [#allocation9], 1
    %635 = vsyncpa [#allocation4], 1
    %s636 = scalar_lea.sflag [#allocation4], 1
    %637 = vsyncpa %s636, 1
    %638 = vsyncpa [#allocation12], 1
    %s639 = scalar_lea.sflag [#allocation12], 1
    %640 = vsyncpa %s639, 1

</llo_original>
